<compile_context>
chip_gen: v5e
topology: v5e:2x2
jax: 0.10.0
libtpu: 0.0.40
codegen_flags: <defaults>
</compile_context>

<pallas_src>
import functools

import jax
import jax.numpy as jnp
from jax.experimental import pallas as pl
from jax.experimental.pallas import tpu as pltpu


_LANE = 128
_TARGET_BLOCK_BYTES = 4 * 1024 * 1024    # per-step input block target
_VMEM_BUDGET_BYTES = 24 * 1024 * 1024    # double-buffered in+out blocks
_VMEM_LIMIT_BYTES = 32 * 1024 * 1024     # scoped VMEM limit (raises v5e's 16 MiB)


def _read_add_kernel(x_ref, o_ref, *, start_index):
    # x_ref: (TB, T, TD)   with T = N + start_index
    # o_ref: (TB, N, TD)
    #
    # Read straight from the ref (no whole-block load followed by slicing):
    # the readout row(s) and the sublane-shifted token window are separate ref
    # reads that feed directly into the VPU add.
    if start_index == 2:
        readout = (x_ref[:, 0:1, :] + x_ref[:, 1:2, :]) * 0.5
    else:
        readout = x_ref[:, 0:1, :]
    o_ref[...] = x_ref[:, start_index:, :] + readout


def _pick_tiles(b, t, n, d_padded, dtype):
    """Choose (TB, TD) batch/channel tiles.

    TD is a lane-dense (multiple-of-128) divisor of the padded channel dim and
    TB a divisor of the batch. Blocks target ~_TARGET_BLOCK_BYTES of input per
    grid step and the double-buffered in+out footprint is kept under
    _VMEM_BUDGET_BYTES (safe on v5e/v6e/v7x scoped-VMEM defaults with the
    raised limit below).
    """
    itemsize = jnp.dtype(dtype).itemsize
    td_opts = [v for v in range(_LANE, d_padded + 1, _LANE) if d_padded % v == 0]

    td = _LANE
    for cand in sorted(td_opts, reverse=True):
        if t * cand * itemsize <= _TARGET_BLOCK_BYTES:
            td = cand
            break

    tb = 1
    for cand in range(b, 0, -1):
        if b % cand == 0 and cand * t * td * itemsize <= _TARGET_BLOCK_BYTES:
            tb = cand
            break

    def footprint(tb_, td_):
        return 2 * tb_ * (t + n) * td_ * itemsize

    while footprint(tb, td) > _VMEM_BUDGET_BYTES and tb > 1:
        tb = max(v for v in range(1, tb) if b % v == 0)
    while footprint(tb, td) > _VMEM_BUDGET_BYTES and td > _LANE:
        td = max(v for v in td_opts if v < td)

    # Guarantee >= 2 grid steps when possible so both v7x TensorCores get
    # independent streams (no effect on single-TC v5e/v6e).
    if (b // tb) * (d_padded // td) < 2:
        if tb > 1:
            tb = max(v for v in range(1, tb) if b % v == 0)
        elif td > _LANE:
            td = max(v for v in td_opts if v < td)
    return tb, td


def read_add_forward(x, *, start_index=1):
    B, T, D = x.shape
    N = T - start_index

    # Lane-dense fallback: pad the channel dim to a multiple of 128 so stores
    # are full-lane vst (not vst.msk); slice the padding off afterwards.
    pad = (-D) % _LANE
    x_in = jnp.pad(x, ((0, 0), (0, 0), (0, pad))) if pad else x
    Dp = D + pad

    TB, TD = _pick_tiles(B, T, N, Dp, x.dtype)
    kernel = functools.partial(_read_add_kernel, start_index=start_index)

    out = pl.pallas_call(
        kernel,
        out_shape=jax.ShapeDtypeStruct((B, N, Dp), x.dtype),
        grid=(B // TB, Dp // TD),
        in_specs=[pl.BlockSpec((TB, T, TD), lambda b, d: (b, 0, d))],
        out_specs=pl.BlockSpec((TB, N, TD), lambda b, d: (b, 0, d)),
        compiler_params=pltpu.CompilerParams(
            dimension_semantics=("parallel", "parallel"),
            vmem_limit_bytes=_VMEM_LIMIT_BYTES),
    )(x_in)
    return out[..., :D] if pad else out


# ----------------------------- pure-JAX reference ---------------------------


def read_add_reference(x, *, start_index=1):
    if start_index == 2:
        readout = (x[:, 0] + x[:, 1]) * 0.5
    else:
        readout = x[:, 0]
    return x[:, start_index:] + readout[:, None, :]


# ----------------------------- main -----------------------------------------

if __name__ == "__main__":
    key = jax.random.PRNGKey(0)

    # start_index = 1 (default): B=2, 64 patch tokens + 1 readout token, D=256
    B, N, D = 2, 64, 256
    x1 = jax.random.normal(key, (B, N + 1, D), jnp.float32)
    out1 = jax.block_until_ready(
        jax.jit(functools.partial(read_add_forward, start_index=1))(x1))
    ref1 = read_add_reference(x1, start_index=1)
    assert out1.shape == (B, N, D), out1.shape
    assert jnp.allclose(out1, ref1, atol=1e-6, rtol=1e-6), float(
        jnp.max(jnp.abs(out1 - ref1)))

    # start_index = 2 path (two readout tokens, averaged)
    x2 = jax.random.normal(jax.random.fold_in(key, 1), (B, N + 2, D), jnp.float32)
    out2 = jax.block_until_ready(
        jax.jit(functools.partial(read_add_forward, start_index=2))(x2))
    ref2 = read_add_reference(x2, start_index=2)
    assert out2.shape == (B, N, D), out2.shape
    assert jnp.allclose(out2, ref2, atol=1e-6, rtol=1e-6), float(
        jnp.max(jnp.abs(out2 - ref2)))

    # Non-lane-multiple channel dim + B=1: exercises the pad fallback and the
    # grid-splitting path (TD halves so both v7x cores would get a step).
    x3 = jax.random.normal(jax.random.fold_in(key, 2), (1, 17, 200), jnp.float32)
    out3 = jax.block_until_ready(
        jax.jit(functools.partial(read_add_forward, start_index=1))(x3))
    ref3 = read_add_reference(x3, start_index=1)
    assert out3.shape == (1, 16, 200), out3.shape
    assert jnp.allclose(out3, ref3, atol=1e-6, rtol=1e-6), float(
        jnp.max(jnp.abs(out3 - ref3)))

    print("KERNEL_OK")
</pallas_src>

<mosaic_0001>
module attributes {stable_mosaic.version = 11 : i64} {
  func.func @_read_add_kernel(%arg0: i32, %arg1: i32, %arg2: memref<1x65x256xf32, #tpu.memory_space<vmem>>, %arg3: memref<1x64x256xf32, #tpu.memory_space<vmem>>) attributes {dimension_semantics = [#tpu.dimension_semantics<parallel>, #tpu.dimension_semantics<parallel>], iteration_bounds = array<i64: 2, 1>, scalar_prefetch = 0 : i64, scratch_operands = 0 : i64, tpu.core_type = #tpu.core_type<tc>, window_params = [{transform_indices = @transform_0, window_bounds = array<i64: 1, 65, 256>}, {transform_indices = @transform_1, window_bounds = array<i64: 1, 64, 256>}]} {
    %c0 = arith.constant 0 : index
    %c0_0 = arith.constant 0 : index
    %c0_1 = arith.constant 0 : index
    %0 = vector.load %arg2[%c0, %c0_0, %c0_1] : memref<1x65x256xf32, #tpu.memory_space<vmem>>, vector<1x1x256xf32>
    %c0_2 = arith.constant 0 : index
    %c1 = arith.constant 1 : index
    %c0_3 = arith.constant 0 : index
    %1 = vector.load %arg2[%c0_2, %c1, %c0_3] : memref<1x65x256xf32, #tpu.memory_space<vmem>>, vector<1x64x256xf32>
    %2 = vector.broadcast %0 : vector<1x1x256xf32> to vector<1x64x256xf32>
    %3 = arith.addf %1, %2 : vector<1x64x256xf32>
    %c0_4 = arith.constant 0 : index
    %c0_5 = arith.constant 0 : index
    %c0_6 = arith.constant 0 : index
    %4 = vector.load %arg3[%c0_4, %c0_5, %c0_6] : memref<1x64x256xf32, #tpu.memory_space<vmem>>, vector<1x64x256xf32>
    tpu.vector_store %arg3[%c0_4, %c0_5, %c0_6], %3 {strides = array<i32>} : memref<1x64x256xf32, #tpu.memory_space<vmem>>, vector<1x64x256xf32>,
    return
  }
  func.func @transform_0(%arg0: i32, %arg1: i32) -> (i32, i32, i32) {
    %c0_i32 = arith.constant 0 : i32
    %c0_i32_0 = arith.constant 0 : i32
    return %arg0, %c0_i32, %arg1 : i32, i32, i32
  }
  func.func @transform_1(%arg0: i32, %arg1: i32) -> (i32, i32, i32) {
    %c0_i32 = arith.constant 0 : i32
    %c0_i32_0 = arith.constant 0 : i32
    return %arg0, %c0_i32, %arg1 : i32, i32, i32
  }
}

</mosaic_0001>

<llo_original>
// kernel: read_add_forward.1
$region0: #{read_add_forward.1}
  #allocation0 [shape = 'u32[]', space=smem, size = 0x4, offset = 0x4, fixed_abs, tag = 'smem constant byte address 0x4 - core index']
  #allocation1 [shape = 'u32[72,128]{1,0:T(1,128)}', space=vmem, size = 0x9000, scoped, tag = 'internal scratch']
  %s0 = inlined_call_operand.vmem [shape: f32[2,65,256], index: 0, kind: input, shape index: {}]
  %s1 = inlined_call_operand.hbm [shape: f32[2,64,256], index: 1, kind: output, shape index: {}]
  %s2 = sld [smem:[#allocation0]]
  $region37: #{read_add_forward.1} parent=0
    _
  %s4 = ssub.s32 1, %s2
  %s5 = scalar_select 0, %s4, %s2
  $region1: #{read_add_forward.1} parent=0
    #allocation2 [shape = 'u8[131072]{0}', space=vmem, size = 0x20000, scoped, tag = 'output window, operand 0']
    #allocation3 [shape = 's32[2]{0}', space=sflag, size = 0x8, scoped, tag = 'scoped memory for read_add_forward.1']
    %6 = vsyncpa [#allocation3], 0
    %s7 = scalar_lea.sflag [#allocation3], 1
    %8 = vsyncpa %s7, 0
    loop: start=0, step=1, limit=4
    $region2: #{read_add_forward.1} parent=1 // loop_pre_header
      _
    $region3: #{read_add_forward.1} parent=1 // loop_header
      %s10 = sphi 0, %s14
      %p11 = scmp.ge.s32.totalorder %s10, 4
      %s17 = sphi 0, %s29
      %s18 = sphi 0, %s25
      %s19 = sphi 0, %s17
      %s20 = sphi 0, %s18
      %s21 = sphi 0, %s19
      %s22 = sphi 0, %s20
      %s34 = sphi 0, %s36
      %s37 = sphi 0, %s34
      %s38 = sphi 0, %s37
      %s54 = sphi 0, %s38
      %s62 = sphi 0, %s64
      %s65 = sphi 0, %s62
      %s66 = sphi 0, %s65
      %s82 = sphi 0, %s66
    $region4: #{read_add_forward.1} parent=1 // loop_header_branch
      %13 = sbr.rel (%p11) target = $region8
    $region5: #{read_add_forward.1} parent=1 // loop_body
      %s15 = ssub.s32 %s10, 1
      %s16 = ssub.s32 %s10, 2
      %s23 = sadd.s32 1, %s18
      %p24 = scmp.ge.s32.totalorder %s23, 1
      %s25 = scalar_select %p24, 0, %s23
      %s26 = sadd.s32 1, %s17
      %s27 = scalar_select %p24, %s26, %s17
      %p28 = scmp.ge.s32.totalorder %s27, 2
      %s29 = scalar_select %p28, 0, %s27
      %s30 = ssub.s32 %s17, %s29
      %s31 = ssub.s32 %s18, %s25
      %s32 = sor.u32 %s30, %s31
      %p33 = scmp.eq.s32.totalorder %s32, 0
      %s35 = sadd.s32 %s34, 1
      %s36 = scalar_select %p33, %s34, %s35
      %p39 = pneg %p33
      %p40 = scmp.eq.s32.totalorder %s10, 1
      %p41 = por %p39, %p40
      %p42 = scmp.ne.s32.totalorder %s34, %s37
      %p43 = scmp.eq.s32.totalorder %s10, 0
      %p44 = por %p42, %p43
      %p45 = scmp.ne.s32.totalorder %s34, %s37
      %p46 = scmp.eq.s32.totalorder %s15, 1
      %p47 = por %p45, %p46
      %p48 = scmp.ne.s32.totalorder %s37, %s38
      %p49 = scmp.eq.s32.totalorder %s15, 0
      %p50 = por %p48, %p49
      %p51 = scmp.ne.s32.totalorder %s37, %s38
      %p52 = scmp.eq.s32.totalorder %s16, 1
      %p53 = por %p51, %p52
      %p55 = scmp.ne.s32.totalorder %s38, %s54
      %p56 = scmp.eq.s32.totalorder %s16, 0
      %p57 = por %p55, %p56
      %s58 = ssub.s32 %s17, %s29
      %s59 = ssub.s32 %s18, %s25
      %s60 = sor.u32 %s58, %s59
      %p61 = scmp.eq.s32.totalorder %s60, 0
      %s63 = sadd.s32 %s62, 1
      %s64 = scalar_select %p61, %s62, %s63
      %p67 = pneg %p61
      %p68 = scmp.eq.s32.totalorder %s10, 1
      %p69 = por %p67, %p68
      %p70 = scmp.ne.s32.totalorder %s62, %s65
      %p71 = scmp.eq.s32.totalorder %s10, 0
      %p72 = por %p70, %p71
      %p73 = scmp.ne.s32.totalorder %s62, %s65
      %p74 = scmp.eq.s32.totalorder %s15, 1
      %p75 = por %p73, %p74
      %p76 = scmp.ne.s32.totalorder %s65, %s66
      %p77 = scmp.eq.s32.totalorder %s15, 0
      %p78 = por %p76, %p77
      %p79 = scmp.ne.s32.totalorder %s65, %s66
      %p80 = scmp.eq.s32.totalorder %s16, 1
      %p81 = por %p79, %p80
      %p83 = scmp.ne.s32.totalorder %s66, %s82
      %p84 = scmp.eq.s32.totalorder %s16, 0
      %p85 = por %p83, %p84
      %p86 = scmp.le.s32.totalorder 1, %s10
      %p87 = scmp.lt.s32.totalorder %s10, 3
      %p88 = pnand %p86, %p87
      %p89 = pneg %p88
      // Predicated region
      $region9: #{read_add_forward.1} parent=5 // pred_check
        _
      $region10: #{read_add_forward.1} parent=5 // pred_check_branch
        %91 = sbr.rel (%p88) target = $region12
      $region11: #{read_add_forward.1} parent=5 // pred_region
        %s92 = ssub.s32 %s10, 1
      $region12: #{read_add_forward.1} parent=5 // pred_fallthru
        _
      %p93 = scmp.lt.s32.totalorder %s10, 2
      // Predicated region
      $region13: #{read_add_forward.1} parent=5 // pred_check
        %p94 = pneg %p93
      $region14: #{read_add_forward.1} parent=5 // pred_check_branch
        %96 = sbr.rel (%p94) target = $region16
      $region15: #{read_add_forward.1} parent=5 // pred_region
        // Predicated region
        $region17: #{read_add_forward.1} parent=15 // pred_check
          %p97 = pneg %p44
        $region18: #{read_add_forward.1} parent=15 // pred_check_branch
          %99 = sbr.rel (%p97) target = $region20
        $region19: #{read_add_forward.1} parent=15 // pred_region
          %s100 = smul.u32 2, %s18
          %p101 = scmp.lt.s32.totalorder %s17, 1
          %s102 = scalar_select %p101, %s17, 1
          %p103 = scmp.lt.s32.totalorder %s100, 1
          %s104 = scalar_select %p103, %s100, 1
          %s105 = smul.addr %s102, 18
          %s106 = sadd.s32 %s104, %s105
          %s107 = smul.addr %s106, 8
          %s108 = scalar_lea.vmem %s0, %s107
          %s109 = smul.u32 2, %s18
        $region20: #{read_add_forward.1} parent=15 // pred_fallthru
          _
      $region16: #{read_add_forward.1} parent=5 // pred_fallthru
        _
      %p110 = scmp.le.s32.totalorder 1, %s10
      %p111 = scmp.lt.s32.totalorder %s10, 3
      %p112 = pnand %p110, %p111
      %p113 = pneg %p112
      // Predicated region
      $region21: #{read_add_forward.1} parent=5 // pred_check
        _
      $region22: #{read_add_forward.1} parent=5 // pred_check_branch
        %115 = sbr.rel (%p112) target = $region24
      $region23: #{read_add_forward.1} parent=5 // pred_region
        %s116 = ssub.s32 %s10, 1
        %s117 = smul.u32 2, %s20
        %p118 = scmp.lt.s32.totalorder %s19, 1
        %s119 = scalar_select %p118, %s19, 1
        %p120 = scmp.lt.s32.totalorder %s117, 1
        %s121 = scalar_select %p120, %s117, 1
        %s122 = smul.addr %s119, 18
        %s123 = sadd.s32 %s121, %s122
        %s124 = smul.addr %s123, 8
        %s125 = scalar_lea.vmem %s0, %s124
        %p126 = pneg %p50
        %p127 = pneg %p47
        %p128 = pneg %p78
        %p129 = pneg %p75
        %s130 = sand.u32 %s65, 1
        %s131 = scalar_lea.sflag [#allocation3], %s130
        %s132 = sand.u32 %s65, 1
        %s133 = smul.addr %s132, 128
        %s134 = scalar_lea.vmem [#allocation2], %s133
        %s135 = smul.u32 2, %s20
        %p136 = scmp.lt.s32.totalorder %s19, 1
        %s137 = scalar_select %p136, %s19, 1
        %p138 = scmp.lt.s32.totalorder %s135, 1
        %s139 = scalar_select %p138, %s135, 1
        %s140 = smul.addr %s137, 18
        %s141 = sadd.s32 %s139, %s140
        %s142 = smul.addr %s141, 8
        %s143 = scalar_lea.vmem %s0, %s142
        %s144 = smul.u32 2, %s20
        %s145 = smul.u32 2, %s20
        %v146 = vld [vmem:[%s143] ss:$8 sm:$0x3]
        %v147 = vld [vmem:[%s143] sm:$0xfe]
        %v148 = vld [vmem:[%s143 + $0x8] sm:$0xfe]
        %v149 = vld [vmem:[%s143 + $0x10] sm:$0xff]
        %v150 = vld [vmem:[%s143 + $0x18] sm:$0xff]
        %v151 = vld [vmem:[%s143 + $0x20] sm:$0xff]
        %v152 = vld [vmem:[%s143 + $0x28] sm:$0xff]
        %v153 = vld [vmem:[%s143 + $0x30] sm:$0xff]
        %v154 = vld [vmem:[%s143 + $0x38] sm:$0xff]
        %v155 = vld [vmem:[%s143 + $0x40] sm:$0xff]
        %v156 = vld [vmem:[%s143 + $0x48] sm:$0xff]
        %v157 = vld [vmem:[%s143 + $0x50] sm:$0xff]
        %v158 = vld [vmem:[%s143 + $0x58] sm:$0xff]
        %v159 = vld [vmem:[%s143 + $0x60] sm:$0xff]
        %v160 = vld [vmem:[%s143 + $0x68] sm:$0xff]
        %v161 = vld [vmem:[%s143 + $0x70] sm:$0xff]
        %v162 = vld [vmem:[%s143 + $0x78] sm:$0xff]
        %v163 = vld [vmem:[%s143 + $0x80] sm:$0x1]
        %v164 = vld [vmem:[%s143 + $0x88] sm:$0x1]
        %v166 = vperm.slane %v146, 0
        %v167 = vperm.slane %v146, 1
        %v170 = vadd.f32 %v147, %v166
        %v171 = vadd.f32 %v148, %v167
        %v172 = vadd.f32 %v149, %v166
        %v173 = vadd.f32 %v150, %v167
        %v174 = vadd.f32 %v151, %v166
        %v175 = vadd.f32 %v152, %v167
        %v176 = vadd.f32 %v153, %v166
        %v177 = vadd.f32 %v154, %v167
        %v178 = vadd.f32 %v155, %v166
        %v179 = vadd.f32 %v156, %v167
        %v180 = vadd.f32 %v157, %v166
        %v181 = vadd.f32 %v158, %v167
        %v182 = vadd.f32 %v159, %v166
        %v183 = vadd.f32 %v160, %v167
        %v184 = vadd.f32 %v161, %v166
        %v185 = vadd.f32 %v162, %v167
        %v186 = vadd.f32 %v163, %v166
        %v187 = vadd.f32 %v164, %v167
        %vm206 = vcmask 1046528
        %v207 = vrot.slane %v170, 1
        %v208 = vrot.slane %v172, 1
        %v209 = vsel %vm206, %v207, %v208
        %v210 = vrot.slane %v171, 1
        %v211 = vrot.slane %v173, 1
        %v212 = vsel %vm206, %v210, %v211
        %v213 = vrot.slane %v174, 1
        %v214 = vsel %vm206, %v208, %v213
        %v215 = vrot.slane %v175, 1
        %v216 = vsel %vm206, %v211, %v215
        %v217 = vrot.slane %v176, 1
        %v218 = vsel %vm206, %v213, %v217
        %v219 = vrot.slane %v177, 1
        %v220 = vsel %vm206, %v215, %v219
        %v221 = vrot.slane %v178, 1
        %v222 = vsel %vm206, %v217, %v221
        %v223 = vrot.slane %v179, 1
        %v224 = vsel %vm206, %v219, %v223
        %v225 = vrot.slane %v180, 1
        %v226 = vsel %vm206, %v221, %v225
        %v227 = vrot.slane %v181, 1
        %v228 = vsel %vm206, %v223, %v227
        %v229 = vrot.slane %v182, 1
        %v230 = vsel %vm206, %v225, %v229
        %v231 = vrot.slane %v183, 1
        %v232 = vsel %vm206, %v227, %v231
        %v233 = vrot.slane %v184, 1
        %v234 = vsel %vm206, %v229, %v233
        %v235 = vrot.slane %v185, 1
        %v236 = vsel %vm206, %v231, %v235
        %v237 = vrot.slane %v186, 1
        %v238 = vsel %vm206, %v233, %v237
        %v239 = vrot.slane %v187, 1
        %v240 = vsel %vm206, %v235, %v239
        %257 = vst [vmem:[%s134] sm:$0xff] %v209
        %258 = vst [vmem:[%s134 + $0x8] sm:$0xff] %v212
        %259 = vst [vmem:[%s134 + $0x10] sm:$0xff] %v214
        %260 = vst [vmem:[%s134 + $0x18] sm:$0xff] %v216
        %261 = vst [vmem:[%s134 + $0x20] sm:$0xff] %v218
        %262 = vst [vmem:[%s134 + $0x28] sm:$0xff] %v220
        %263 = vst [vmem:[%s134 + $0x30] sm:$0xff] %v222
        %264 = vst [vmem:[%s134 + $0x38] sm:$0xff] %v224
        %265 = vst [vmem:[%s134 + $0x40] sm:$0xff] %v226
        %266 = vst [vmem:[%s134 + $0x48] sm:$0xff] %v228
        %267 = vst [vmem:[%s134 + $0x50] sm:$0xff] %v230
        %268 = vst [vmem:[%s134 + $0x58] sm:$0xff] %v232
        %269 = vst [vmem:[%s134 + $0x60] sm:$0xff] %v234
        %270 = vst [vmem:[%s134 + $0x68] sm:$0xff] %v236
        %271 = vst [vmem:[%s134 + $0x70] sm:$0xff] %v238
        %272 = vst [vmem:[%s134 + $0x78] sm:$0xff] %v240
        %s273 = sand.u32 %s65, 1
        %s274 = scalar_lea.sflag [#allocation3], %s273
        %s275 = sand.u32 %s65, 1
        %s276 = smul.addr %s275, 128
        %s277 = scalar_lea.vmem [#allocation2], %s276
        // Predicated region
        $region25: #{read_add_forward.1} parent=23 // pred_check
          %p278 = pneg %p75
        $region26: #{read_add_forward.1} parent=23 // pred_check_branch
          %280 = sbr.rel (%p278) target = $region28
        $region27: #{read_add_forward.1} parent=23 // pred_region
          %s281 = smul.u32 2, %s20
          %283 = vsyncadd %s274, 0
          %s284 = smul.addr %s19, 16
          %s285 = sadd.s32 %s281, %s284
          %s286 = smul.addr %s285, 8
          %s287 = scalar_lea.hbm %s1, %s286
          %s288 = sshll.u32 %s277, 4
          %s289 = int_to_ptr.vmem [resolvable:$true] %s288
          %s290 = sshll.u32 %s287, 4
          %s291 = int_to_ptr.hbm [resolvable:$true] %s290
          %296 = dma.vmem_to_hbm [thread:$0]  %s289, 2048, %s291, %s274, 256, 256, 16
        $region28: #{read_add_forward.1} parent=23 // pred_fallthru
          _
      $region24: #{read_add_forward.1} parent=5 // pred_fallthru
        _
      %p297 = scmp.le.s32.totalorder 2, %s10
      // Predicated region
      $region29: #{read_add_forward.1} parent=5 // pred_check
        %p298 = pneg %p297
      $region30: #{read_add_forward.1} parent=5 // pred_check_branch
        %300 = sbr.rel (%p298) target = $region32
      $region31: #{read_add_forward.1} parent=5 // pred_region
        %s301 = ssub.s32 %s10, 2
        // Predicated region
        $region33: #{read_add_forward.1} parent=31 // pred_check
          %p302 = pneg %p81
        $region34: #{read_add_forward.1} parent=31 // pred_check_branch
          %304 = sbr.rel (%p302) target = $region36
        $region35: #{read_add_forward.1} parent=31 // pred_region
          %s305 = sand.u32 %s66, 1
          %s306 = scalar_lea.sflag [#allocation3], %s305
          %s307 = sand.u32 %s66, 1
          %s308 = smul.addr %s307, 128
          %s309 = scalar_lea.vmem [#allocation2], %s308
          %311 = dma.done %s306, 2048
        $region36: #{read_add_forward.1} parent=31 // pred_fallthru
          _
      $region32: #{read_add_forward.1} parent=5 // pred_fallthru
        _
    $region6: #{read_add_forward.1} parent=1 // loop_footer
      %s14 = sadd.s32 1, %s10
    $region7: #{read_add_forward.1} parent=1 // loop_footer_branch
      %9 = sbr.rel target = $region3
    $region8: #{read_add_forward.1} parent=1 // loop_exit
      _
    %312 = vsyncpa [#allocation3], 1
    %s313 = scalar_lea.sflag [#allocation3], 1
    %314 = vsyncpa %s313, 1

</llo_original>
